<compile_context>
chip_gen: v5e
topology: v5e:2x2
jax: 0.10.0
libtpu: 0.0.40
codegen_flags: <defaults>
</compile_context>

<pallas_src>
import functools

import jax
import jax.numpy as jnp
from jax.experimental import pallas as pl
from jax.experimental.pallas import tpu as pltpu


def _round_up(x, m):
    return (x + m - 1) // m * m


# ---------------------------------------------------------------------------
# Kernel 1: row-tiled (word + position) DMA gather + token-type select -> LayerNorm
# ---------------------------------------------------------------------------
def _text_embed_ln_kernel(wid_ref, pid_ref,            # scalar-prefetch ids (SMEM)
                          word_hbm, pos_hbm,           # full tables left in HBM (pl.ANY)
                          ttid_ref,                    # (tile, 1) int32 token-type ids
                          tt_tab_ref,                  # (T, H) resident token-type table
                          g_ref, b_ref,                # resident LN gamma / beta (1, H)
                          out_ref,                     # (tile, H) output block
                          wbuf, pbuf, sem,             # scratch: gather buffers + DMA sems
                          *, eps, tile, n_types):
    base = pl.program_id(0) * tile

    # Issue every row gather of this tile up front so the small (~H*itemsize) row DMAs
    # overlap each other instead of paying their latency serially.
    @pl.loop(0, tile)
    def _issue(r):
        w_id = wid_ref[base + r]
        p_id = pid_ref[base + r]
        pltpu.make_async_copy(word_hbm.at[pl.ds(w_id, 1)], wbuf.at[pl.ds(r, 1)],
                              sem.at[0]).start()
        pltpu.make_async_copy(pos_hbm.at[pl.ds(p_id, 1)], pbuf.at[pl.ds(r, 1)],
                              sem.at[1]).start()

    # Wait for all row copies (one row's worth per wait; completions may land in any
    # order — the shared semaphore just accumulates).
    @pl.loop(0, tile)
    def _wait(r):
        pltpu.make_async_copy(word_hbm.at[pl.ds(0, 1)], wbuf.at[pl.ds(r, 1)],
                              sem.at[0]).wait()
        pltpu.make_async_copy(pos_hbm.at[pl.ds(0, 1)], pbuf.at[pl.ds(r, 1)],
                              sem.at[1]).wait()

    s = wbuf[...].astype(jnp.float32) + pbuf[...].astype(jnp.float32)

    # Token-type table is tiny (type_vocab rows): select in-kernel, no gather DMA.
    ids = ttid_ref[...]                                 # (tile, 1) int32
    for t in range(n_types):                            # static, tiny unrolled loop
        s = s + (ids == t).astype(jnp.float32) * tt_tab_ref[t:t + 1, :].astype(jnp.float32)

    mean = jnp.mean(s, axis=-1, keepdims=True)
    c = s - mean
    var = jnp.mean(c * c, axis=-1, keepdims=True)
    inv = jax.lax.rsqrt(var + eps)                      # EUP rsqrt
    y = c * inv * g_ref[...].astype(jnp.float32) + b_ref[...].astype(jnp.float32)
    out_ref[...] = y.astype(out_ref.dtype)


def text_embeddings_layernorm(word_table, tok_type_table, pos_table, gamma, beta,
                              input_ids, token_type_ids, position_ids,
                              *, eps, out_dtype=jnp.float32, row_tile=256):
    n = input_ids.shape[0]
    H = word_table.shape[-1]
    T = tok_type_table.shape[0]

    tile = min(row_tile, _round_up(n, 8))
    n_pad = _round_up(n, tile)
    pad = n_pad - n
    wid = jnp.pad(input_ids.astype(jnp.int32), (0, pad))          # pad with valid id 0
    pid = jnp.pad(position_ids.astype(jnp.int32), (0, pad))
    ttid = jnp.pad(token_type_ids.astype(jnp.int32), (0, pad)).reshape(n_pad, 1)

    grid_spec = pltpu.PrefetchScalarGridSpec(
        num_scalar_prefetch=2,
        grid=(n_pad // tile,),
        in_specs=[
            pl.BlockSpec(memory_space=pl.ANY),                       # word table (HBM)
            pl.BlockSpec(memory_space=pl.ANY),                       # position table (HBM)
            pl.BlockSpec((tile, 1), lambda i, w, p: (i, 0)),         # token-type ids
            pl.BlockSpec((T, H), lambda i, w, p: (0, 0)),            # token-type table (resident)
            pl.BlockSpec((1, H), lambda i, w, p: (0, 0)),            # gamma (resident)
            pl.BlockSpec((1, H), lambda i, w, p: (0, 0)),            # beta  (resident)
        ],
        out_specs=pl.BlockSpec((tile, H), lambda i, w, p: (i, 0)),
        scratch_shapes=[
            pltpu.VMEM((tile, H), word_table.dtype),
            pltpu.VMEM((tile, H), pos_table.dtype),
            pltpu.SemaphoreType.DMA((2,)),
        ],
    )
    out = pl.pallas_call(
        functools.partial(_text_embed_ln_kernel, eps=eps, tile=tile, n_types=T),
        grid_spec=grid_spec,
        out_shape=jax.ShapeDtypeStruct((n_pad, H), out_dtype),
        compiler_params=pltpu.CompilerParams(dimension_semantics=("parallel",)),
    )(wid, pid, word_table, pos_table, ttid,
      tok_type_table, gamma.reshape(1, H), beta.reshape(1, H))
    return out[:n]


# ---------------------------------------------------------------------------
# Kernel 2: visual projection (MXU, bf16 operands / f32 acc) + pos row + token-type
#           select -> LayerNorm.  Weight kept in torch (H, Dv) layout (no wrapper .T).
# ---------------------------------------------------------------------------
def _visual_proj_ln_kernel(v_ref, w_ref, b_ref, vpos_ref, vttid_ref, vtt_tab_ref,
                           g_ref, be_ref, out_ref, *, eps, n_types, mxu_dtype):
    acc = jax.lax.dot_general(
        v_ref[...].astype(mxu_dtype), w_ref[...],        # (tile, Dv) x (H, Dv) contract Dv
        dimension_numbers=(((1,), (1,)), ((), ())),
        preferred_element_type=jnp.float32)

    s = acc + b_ref[...].astype(jnp.float32) + vpos_ref[...].astype(jnp.float32)
    ids = vttid_ref[...]                                 # (tile, 1) int32
    for t in range(n_types):                             # tiny static loop
        s = s + (ids == t).astype(jnp.float32) * vtt_tab_ref[t:t + 1, :].astype(jnp.float32)

    mean = jnp.mean(s, axis=-1, keepdims=True)
    c = s - mean
    var = jnp.mean(c * c, axis=-1, keepdims=True)
    y = (c * jax.lax.rsqrt(var + eps) * g_ref[...].astype(jnp.float32)
         + be_ref[...].astype(jnp.float32))
    out_ref[...] = y.astype(out_ref.dtype)


def visual_projection_layernorm(visual_flat, weight_hd, bias, vis_pos_row,
                                vtt_ids, vtt_table, gamma, beta,
                                *, eps, out_dtype=jnp.float32,
                                mxu_dtype=jnp.bfloat16, row_tile=256):
    n, dv = visual_flat.shape
    H = weight_hd.shape[0]
    T = vtt_table.shape[0]

    tile = min(row_tile, _round_up(n, 8))
    n_pad = _round_up(n, tile)
    pad = n_pad - n
    if pad:
        visual_flat = jnp.pad(visual_flat, ((0, pad), (0, 0)))
        vtt_ids = jnp.pad(vtt_ids, (0, pad))
    vtt_ids2 = vtt_ids.astype(jnp.int32).reshape(n_pad, 1)

    # bf16 MXU operands (f32 accumulation).  Ideally cast once at parameter-load time.
    w = weight_hd.astype(mxu_dtype)

    grid_spec = pltpu.PrefetchScalarGridSpec(
        num_scalar_prefetch=0,
        grid=(n_pad // tile,),
        in_specs=[
            pl.BlockSpec((tile, dv), lambda i: (i, 0)),   # activations (row tile)
            pl.BlockSpec((H, dv), lambda i: (0, 0)),      # weight, torch layout, resident
            pl.BlockSpec((1, H), lambda i: (0, 0)),       # bias (resident)
            pl.BlockSpec((1, H), lambda i: (0, 0)),       # visual position row (id 0)
            pl.BlockSpec((tile, 1), lambda i: (i, 0)),    # visual token-type ids
            pl.BlockSpec((T, H), lambda i: (0, 0)),       # visual token-type table (resident)
            pl.BlockSpec((1, H), lambda i: (0, 0)),       # gamma (resident)
            pl.BlockSpec((1, H), lambda i: (0, 0)),       # beta  (resident)
        ],
        out_specs=pl.BlockSpec((tile, H), lambda i: (i, 0)),
    )
    out = pl.pallas_call(
        functools.partial(_visual_proj_ln_kernel, eps=eps, n_types=T, mxu_dtype=mxu_dtype),
        grid_spec=grid_spec,
        out_shape=jax.ShapeDtypeStruct((n_pad, H), out_dtype),
        compiler_params=pltpu.CompilerParams(dimension_semantics=("parallel",)),
    )(visual_flat, w, bias.reshape(1, H), vis_pos_row.reshape(1, H),
      vtt_ids2, vtt_table, gamma.reshape(1, H), beta.reshape(1, H))
    return out[:n]


# ---------------------------------------------------------------------------
# Module wrapper (eval-mode forward; dropout is identity)
# ---------------------------------------------------------------------------
def visual_bert_embeddings(params, input_ids, visual_embeds=None,
                           token_type_ids=None, position_ids=None,
                           visual_token_type_ids=None, image_text_alignment=None,
                           *, out_dtype=jnp.float32, mxu_dtype=jnp.bfloat16):
    eps = params["eps"]
    H = params["word_embeddings"].shape[-1]
    B, S = input_ids.shape

    if token_type_ids is None:
        token_type_ids = jnp.zeros((B, S), dtype=jnp.int32)
    if position_ids is None:
        position_ids = jnp.broadcast_to(jnp.arange(S, dtype=jnp.int32)[None, :], (B, S))

    text = text_embeddings_layernorm(
        params["word_embeddings"], params["token_type_embeddings"],
        params["position_embeddings"], params["ln_gamma"], params["ln_beta"],
        input_ids.reshape(-1), token_type_ids.reshape(-1), position_ids.reshape(-1),
        eps=eps, out_dtype=out_dtype).reshape(B, S, H)

    if visual_embeds is None:
        return text   # dropout: identity in eval mode

    if image_text_alignment is not None:
        # TODO(synk): image_text_alignment weighted visual-position path (masked mean
        # over alignment targets) not implemented; only the default (None) branch is.
        raise NotImplementedError("image_text_alignment path not implemented")

    Bv, Sv, Dv = visual_embeds.shape
    if visual_token_type_ids is None:
        visual_token_type_ids = jnp.ones((Bv, Sv), dtype=jnp.int32)

    vis = visual_projection_layernorm(
        visual_embeds.reshape(Bv * Sv, Dv),
        params["visual_projection_weight"],          # torch (H, Dv) layout — no .T copy
        params["visual_projection_bias"],
        params["visual_position_embeddings"][0],     # visual position ids are all zero
        visual_token_type_ids.reshape(-1),
        params["visual_token_type_embeddings"],
        params["ln_gamma"], params["ln_beta"],
        eps=eps, out_dtype=out_dtype, mxu_dtype=mxu_dtype).reshape(Bv, Sv, H)

    # TODO(synk): write both kernels directly into one preallocated (B, S+Sv, H) buffer
    # (input_output_aliases) to drop this extra read+write of the activation.
    return jnp.concatenate([text, vis], axis=1)


# ---------------------------------------------------------------------------
# Pure-JAX reference (for numerical verification, f32 math)
# ---------------------------------------------------------------------------
def reference_embeddings(params, input_ids, visual_embeds):
    B, S = input_ids.shape
    Bv, Sv, Dv = visual_embeds.shape
    token_type_ids = jnp.zeros((B, S), dtype=jnp.int32)
    position_ids = jnp.broadcast_to(jnp.arange(S, dtype=jnp.int32)[None, :], (B, S))
    emb = (params["word_embeddings"][input_ids]
           + params["token_type_embeddings"][token_type_ids]
           + params["position_embeddings"][position_ids])

    vtt_ids = jnp.ones((Bv, Sv), dtype=jnp.int32)
    vpos_ids = jnp.zeros((Bv, Sv), dtype=jnp.int32)
    vproj = visual_embeds @ params["visual_projection_weight"].T + params["visual_projection_bias"]
    vemb = (vproj
            + params["visual_position_embeddings"][vpos_ids]
            + params["visual_token_type_embeddings"][vtt_ids])

    allemb = jnp.concatenate([emb, vemb], axis=1).astype(jnp.float32)
    mean = jnp.mean(allemb, axis=-1, keepdims=True)
    c = allemb - mean
    var = jnp.mean(c * c, axis=-1, keepdims=True)
    return c * jax.lax.rsqrt(var + params["eps"]) * params["ln_gamma"] + params["ln_beta"]


if __name__ == "__main__":
    key = jax.random.PRNGKey(0)
    B, S, Sv = 2, 8, 4
    H, Dv = 128, 64
    vocab, max_pos, type_vocab = 48, 32, 2
    eps = 1e-12

    ks = jax.random.split(key, 10)
    params = {
        "word_embeddings": 0.02 * jax.random.normal(ks[0], (vocab, H), jnp.float32),
        "position_embeddings": 0.02 * jax.random.normal(ks[1], (max_pos, H), jnp.float32),
        "token_type_embeddings": 0.02 * jax.random.normal(ks[2], (type_vocab, H), jnp.float32),
        "visual_projection_weight": 0.02 * jax.random.normal(ks[3], (H, Dv), jnp.float32),
        "visual_projection_bias": 0.02 * jax.random.normal(ks[4], (H,), jnp.float32),
        "ln_gamma": 1.0 + 0.1 * jax.random.normal(ks[5], (H,), jnp.float32),
        "ln_beta": 0.02 * jax.random.normal(ks[6], (H,), jnp.float32),
        "eps": eps,
    }
    # config.special_visual_initialize=True: visual tables start as copies of text tables.
    params["visual_token_type_embeddings"] = params["token_type_embeddings"]
    params["visual_position_embeddings"] = params["position_embeddings"]

    input_ids = jax.random.randint(ks[7], (B, S), 0, vocab, dtype=jnp.int32)
    visual_embeds = jax.random.normal(ks[8], (B, Sv, Dv), jnp.float32)

    ref = reference_embeddings(params, input_ids, visual_embeds)

    # f32 MXU path (tight-ish check; tolerance covers TPU default matmul precision).
    out_f32 = visual_bert_embeddings(params, input_ids, visual_embeds,
                                     mxu_dtype=jnp.float32)
    out_f32 = jax.block_until_ready(out_f32)
    assert out_f32.shape == (B, S + Sv, H), out_f32.shape
    err32 = float(jnp.max(jnp.abs(out_f32 - ref)))
    assert err32 < 3e-2, f"f32 path max abs error too large: {err32}"

    # Default bf16-MXU path (looser tolerance vs. the f32 reference).
    out_bf16 = visual_bert_embeddings(params, input_ids, visual_embeds)
    out_bf16 = jax.block_until_ready(out_bf16)
    assert out_bf16.shape == (B, S + Sv, H), out_bf16.shape
    errbf = float(jnp.max(jnp.abs(out_bf16 - ref)))
    assert errbf < 8e-2, f"bf16 path max abs error too large: {errbf}"

    print("KERNEL_OK")
</pallas_src>

<mosaic_0001>
module attributes {stable_mosaic.version = 11 : i64} {
  func.func @_text_embed_ln_kernel(%arg0: i32, %arg1: memref<16xi32, #tpu.memory_space<smem>>, %arg2: memref<16xi32, #tpu.memory_space<smem>>, %arg3: memref<48x128xf32, #tpu.memory_space<any>>, %arg4: memref<32x128xf32, #tpu.memory_space<any>>, %arg5: memref<16x1xi32, #tpu.memory_space<vmem>>, %arg6: memref<2x128xf32, #tpu.memory_space<vmem>>, %arg7: memref<1x128xf32, #tpu.memory_space<vmem>>, %arg8: memref<1x128xf32, #tpu.memory_space<vmem>>, %arg9: memref<16x128xf32, #tpu.memory_space<vmem>>, %arg10: memref<16x128xf32, #tpu.memory_space<vmem>>, %arg11: memref<16x128xf32, #tpu.memory_space<vmem>>, %arg12: memref<2x!tpu.dma_semaphore, #tpu.memory_space<semaphore_mem>>) attributes {dimension_semantics = [#tpu.dimension_semantics<parallel>], iteration_bounds = array<i64: 1>, scalar_prefetch = 2 : i64, scratch_operands = 3 : i64, tpu.core_type = #tpu.core_type<tc>, window_params = [{}, {}, {transform_indices = @transform_2, window_bounds = array<i64: 16, 1>}, {pipeline_mode = #tpu.pipeline_mode<synchronous>, transform_indices = @transform_3, window_bounds = array<i64: 2, 128>}, {pipeline_mode = #tpu.pipeline_mode<synchronous>, transform_indices = @transform_4, window_bounds = array<i64: 1, 128>}, {pipeline_mode = #tpu.pipeline_mode<synchronous>, transform_indices = @transform_5, window_bounds = array<i64: 1, 128>}, {transform_indices = @transform_6, window_bounds = array<i64: 16, 128>}]} {
    %c16_i32 = arith.constant 16 : i32
    %0 = arith.muli %arg0, %c16_i32 : i32
    %c0_i32 = arith.constant 0 : i32
    %c16_i32_0 = arith.constant 16 : i32
    %1 = arith.addi %c0_i32, %c16_i32_0 : i32
    %c1_i32 = arith.constant 1 : i32
    scf.for %arg13 = %c0_i32 to %1 step %c1_i32  : i32 {
      %c1_i32_26 = arith.constant 1 : i32
      %48 = arith.muli %arg13, %c1_i32_26 : i32
      %c0_i32_27 = arith.constant 0 : i32
      %49 = arith.addi %c0_i32_27, %48 : i32
      %50 = arith.addi %0, %49 : i32
      %51 = arith.index_cast %50 : i32 to index
      %52 = memref.load %arg1[%51] : memref<16xi32, #tpu.memory_space<smem>>
      %53 = arith.addi %0, %49 : i32
      %54 = arith.index_cast %53 : i32 to index
      %55 = memref.load %arg2[%54] : memref<16xi32, #tpu.memory_space<smem>>
      %c0_i32_28 = arith.constant 0 : i32
      %c0_i32_29 = arith.constant 0 : i32
      %56 = tpu.memref_slice %arg3[%52, %c0_i32_29] : memref<48x128xf32, #tpu.memory_space<any>> -> memref<1x128xf32, #tpu.memory_space<any>>
      %c0_i32_30 = arith.constant 0 : i32
      %57 = tpu.memref_slice %arg10[%49, %c0_i32_30] : memref<16x128xf32, #tpu.memory_space<vmem>> -> memref<1x128xf32, #tpu.memory_space<vmem>>
      %58 = tpu.memref_slice %arg12[%c0_i32_28] : memref<2x!tpu.dma_semaphore, #tpu.memory_space<semaphore_mem>> -> memref<1x!tpu.dma_semaphore, #tpu.memory_space<semaphore_mem>>
      %59 = tpu.memref_squeeze %58 : memref<1x!tpu.dma_semaphore, #tpu.memory_space<semaphore_mem>> -> memref<!tpu.dma_semaphore, #tpu.memory_space<semaphore_mem>>
      tpu.enqueue_dma source(%56 : memref<1x128xf32, #tpu.memory_space<any>>) target(%57 : memref<1x128xf32, #tpu.memory_space<vmem>>) target_semaphore(%59 : memref<!tpu.dma_semaphore, #tpu.memory_space<semaphore_mem>>)
      %c1_i32_31 = arith.constant 1 : i32
      %c0_i32_32 = arith.constant 0 : i32
      %60 = tpu.memref_slice %arg4[%55, %c0_i32_32] : memref<32x128xf32, #tpu.memory_space<any>> -> memref<1x128xf32, #tpu.memory_space<any>>
      %c0_i32_33 = arith.constant 0 : i32
      %61 = tpu.memref_slice %arg11[%49, %c0_i32_33] : memref<16x128xf32, #tpu.memory_space<vmem>> -> memref<1x128xf32, #tpu.memory_space<vmem>>
      %62 = tpu.memref_slice %arg12[%c1_i32_31] : memref<2x!tpu.dma_semaphore, #tpu.memory_space<semaphore_mem>> -> memref<1x!tpu.dma_semaphore, #tpu.memory_space<semaphore_mem>>
      %63 = tpu.memref_squeeze %62 : memref<1x!tpu.dma_semaphore, #tpu.memory_space<semaphore_mem>> -> memref<!tpu.dma_semaphore, #tpu.memory_space<semaphore_mem>>
      tpu.enqueue_dma source(%60 : memref<1x128xf32, #tpu.memory_space<any>>) target(%61 : memref<1x128xf32, #tpu.memory_space<vmem>>) target_semaphore(%63 : memref<!tpu.dma_semaphore, #tpu.memory_space<semaphore_mem>>)
    }
    %c16_i32_1 = arith.constant 16 : i32
    %c0_i32_2 = arith.constant 0 : i32
    %c16_i32_3 = arith.constant 16 : i32
    %2 = arith.addi %c0_i32_2, %c16_i32_3 : i32
    %c1_i32_4 = arith.constant 1 : i32
    scf.for %arg13 = %c0_i32_2 to %2 step %c1_i32_4  : i32 {
      %c1_i32_26 = arith.constant 1 : i32
      %48 = arith.muli %arg13, %c1_i32_26 : i32
      %c0_i32_27 = arith.constant 0 : i32
      %49 = arith.addi %c0_i32_27, %48 : i32
      %c0_i32_28 = arith.constant 0 : i32
      %c0_i32_29 = arith.constant 0 : i32
      %c0_i32_30 = arith.constant 0 : i32
      %50 = tpu.memref_slice %arg3[%c0_i32_29, %c0_i32_30] : memref<48x128xf32, #tpu.memory_space<any>> -> memref<1x128xf32, #tpu.memory_space<any>>
      %c0_i32_31 = arith.constant 0 : i32
      %51 = tpu.memref_slice %arg10[%49, %c0_i32_31] : memref<16x128xf32, #tpu.memory_space<vmem>> -> memref<1x128xf32, #tpu.memory_space<vmem>>
      %52 = tpu.memref_slice %arg12[%c0_i32_28] : memref<2x!tpu.dma_semaphore, #tpu.memory_space<semaphore_mem>> -> memref<1x!tpu.dma_semaphore, #tpu.memory_space<semaphore_mem>>
      %53 = tpu.memref_squeeze %52 : memref<1x!tpu.dma_semaphore, #tpu.memory_space<semaphore_mem>> -> memref<!tpu.dma_semaphore, #tpu.memory_space<semaphore_mem>>
      tpu.wait_dma2 semaphore(%53 : memref<!tpu.dma_semaphore, #tpu.memory_space<semaphore_mem>>) src(%50 : memref<1x128xf32, #tpu.memory_space<any>>) dst(%51 : memref<1x128xf32, #tpu.memory_space<vmem>>)
      %c1_i32_32 = arith.constant 1 : i32
      %c0_i32_33 = arith.constant 0 : i32
      %c0_i32_34 = arith.constant 0 : i32
      %54 = tpu.memref_slice %arg4[%c0_i32_33, %c0_i32_34] : memref<32x128xf32, #tpu.memory_space<any>> -> memref<1x128xf32, #tpu.memory_space<any>>
      %c0_i32_35 = arith.constant 0 : i32
      %55 = tpu.memref_slice %arg11[%49, %c0_i32_35] : memref<16x128xf32, #tpu.memory_space<vmem>> -> memref<1x128xf32, #tpu.memory_space<vmem>>
      %56 = tpu.memref_slice %arg12[%c1_i32_32] : memref<2x!tpu.dma_semaphore, #tpu.memory_space<semaphore_mem>> -> memref<1x!tpu.dma_semaphore, #tpu.memory_space<semaphore_mem>>
      %57 = tpu.memref_squeeze %56 : memref<1x!tpu.dma_semaphore, #tpu.memory_space<semaphore_mem>> -> memref<!tpu.dma_semaphore, #tpu.memory_space<semaphore_mem>>
      tpu.wait_dma2 semaphore(%57 : memref<!tpu.dma_semaphore, #tpu.memory_space<semaphore_mem>>) src(%54 : memref<1x128xf32, #tpu.memory_space<any>>) dst(%55 : memref<1x128xf32, #tpu.memory_space<vmem>>)
    }
    %c16_i32_5 = arith.constant 16 : i32
    %c0 = arith.constant 0 : index
    %c0_6 = arith.constant 0 : index
    %3 = vector.load %arg10[%c0, %c0_6] : memref<16x128xf32, #tpu.memory_space<vmem>>, vector<16x128xf32>
    %c0_7 = arith.constant 0 : index
    %c0_8 = arith.constant 0 : index
    %4 = vector.load %arg11[%c0_7, %c0_8] : memref<16x128xf32, #tpu.memory_space<vmem>>, vector<16x128xf32>
    %5 = arith.addf %3, %4 : vector<16x128xf32>
    %c0_9 = arith.constant 0 : index
    %c0_10 = arith.constant 0 : index
    %6 = vector.load %arg5[%c0_9, %c0_10] : memref<16x1xi32, #tpu.memory_space<vmem>>, vector<16x1xi32>
    %c0_i32_11 = arith.constant 0 : i32
    %7 = vector.broadcast %c0_i32_11 : i32 to vector<16x1xi32>
    %8 = arith.cmpi eq, %6, %7 : vector<16x1xi32>
    %9 = arith.extui %8 : vector<16x1xi1> to vector<16x1xi32>
    %10 = arith.sitofp %9 : vector<16x1xi32> to vector<16x1xf32>
    %c0_12 = arith.constant 0 : index
    %c0_13 = arith.constant 0 : index
    %11 = vector.load %arg6[%c0_12, %c0_13] : memref<2x128xf32, #tpu.memory_space<vmem>>, vector<1x128xf32>
    %12 = vector.broadcast %10 : vector<16x1xf32> to vector<16x128xf32>
    %13 = vector.broadcast %11 : vector<1x128xf32> to vector<16x128xf32>
    %14 = arith.mulf %12, %13 : vector<16x128xf32>
    %15 = arith.addf %5, %14 : vector<16x128xf32>
    %c1_i32_14 = arith.constant 1 : i32
    %16 = vector.broadcast %c1_i32_14 : i32 to vector<16x1xi32>
    %17 = arith.cmpi eq, %6, %16 : vector<16x1xi32>
    %18 = arith.extui %17 : vector<16x1xi1> to vector<16x1xi32>
    %19 = arith.sitofp %18 : vector<16x1xi32> to vector<16x1xf32>
    %c1 = arith.constant 1 : index
    %c0_15 = arith.constant 0 : index
    %20 = vector.load %arg6[%c1, %c0_15] : memref<2x128xf32, #tpu.memory_space<vmem>>, vector<1x128xf32>
    %21 = vector.broadcast %19 : vector<16x1xf32> to vector<16x128xf32>
    %22 = vector.broadcast %20 : vector<1x128xf32> to vector<16x128xf32>
    %23 = arith.mulf %21, %22 : vector<16x128xf32>
    %24 = arith.addf %15, %23 : vector<16x128xf32>
    %cst = arith.constant dense<0.000000e+00> : vector<16xf32>
    %25 = vector.multi_reduction <add>, %24, %cst [1] : vector<16x128xf32> to vector<16xf32>
    %26 = vector.shape_cast %25 : vector<16xf32> to vector<16x1xf32>
    %cst_16 = arith.constant 1.280000e+02 : f32
    %27 = vector.broadcast %cst_16 : f32 to vector<16x1xf32>
    %28 = arith.divf %26, %27 : vector<16x1xf32>
    %29 = vector.broadcast %28 : vector<16x1xf32> to vector<16x128xf32>
    %30 = arith.subf %24, %29 : vector<16x128xf32>
    %31 = arith.mulf %30, %30 : vector<16x128xf32>
    %cst_17 = arith.constant dense<0.000000e+00> : vector<16xf32>
    %32 = vector.multi_reduction <add>, %31, %cst_17 [1] : vector<16x128xf32> to vector<16xf32>
    %33 = vector.shape_cast %32 : vector<16xf32> to vector<16x1xf32>
    %cst_18 = arith.constant 1.280000e+02 : f32
    %34 = vector.broadcast %cst_18 : f32 to vector<16x1xf32>
    %35 = arith.divf %33, %34 : vector<16x1xf32>
    %cst_19 = arith.constant 9.99999996E-13 : f32
    %36 = vector.broadcast %cst_19 : f32 to vector<16x1xf32>
    %37 = arith.addf %35, %36 : vector<16x1xf32>
    %38 = math.rsqrt %37 : vector<16x1xf32>
    %39 = vector.broadcast %38 : vector<16x1xf32> to vector<16x128xf32>
    %40 = arith.mulf %30, %39 : vector<16x128xf32>
    %c0_20 = arith.constant 0 : index
    %c0_21 = arith.constant 0 : index
    %41 = vector.load %arg7[%c0_20, %c0_21] : memref<1x128xf32, #tpu.memory_space<vmem>>, vector<1x128xf32>
    %42 = vector.broadcast %41 : vector<1x128xf32> to vector<16x128xf32>
    %43 = arith.mulf %40, %42 : vector<16x128xf32>
    %c0_22 = arith.constant 0 : index
    %c0_23 = arith.constant 0 : index
    %44 = vector.load %arg8[%c0_22, %c0_23] : memref<1x128xf32, #tpu.memory_space<vmem>>, vector<1x128xf32>
    %45 = vector.broadcast %44 : vector<1x128xf32> to vector<16x128xf32>
    %46 = arith.addf %43, %45 : vector<16x128xf32>
    %c0_24 = arith.constant 0 : index
    %c0_25 = arith.constant 0 : index
    %47 = vector.load %arg9[%c0_24, %c0_25] : memref<16x128xf32, #tpu.memory_space<vmem>>, vector<16x128xf32>
    tpu.vector_store %arg9[%c0_24, %c0_25], %46 {strides = array<i32>} : memref<16x128xf32, #tpu.memory_space<vmem>>, vector<16x128xf32>,
    return
  }
  func.func @transform_2(%arg0: i32, %arg1: memref<16xi32, #tpu.memory_space<smem>>, %arg2: memref<16xi32, #tpu.memory_space<smem>>) -> (i32, i32) {
    %c0_i32 = arith.constant 0 : i32
    %c0_i32_0 = arith.constant 0 : i32
    return %arg0, %c0_i32 : i32, i32
  }
  func.func @transform_3(%arg0: i32, %arg1: memref<16xi32, #tpu.memory_space<smem>>, %arg2: memref<16xi32, #tpu.memory_space<smem>>) -> (i32, i32) {
    %c0_i32 = arith.constant 0 : i32
    %c0_i32_0 = arith.constant 0 : i32
    %c0_i32_1 = arith.constant 0 : i32
    return %c0_i32, %c0_i32_0 : i32, i32
  }
  func.func @transform_4(%arg0: i32, %arg1: memref<16xi32, #tpu.memory_space<smem>>, %arg2: memref<16xi32, #tpu.memory_space<smem>>) -> (i32, i32) {
    %c0_i32 = arith.constant 0 : i32
    %c0_i32_0 = arith.constant 0 : i32
    %c0_i32_1 = arith.constant 0 : i32
    return %c0_i32, %c0_i32_0 : i32, i32
  }
  func.func @transform_5(%arg0: i32, %arg1: memref<16xi32, #tpu.memory_space<smem>>, %arg2: memref<16xi32, #tpu.memory_space<smem>>) -> (i32, i32) {
    %c0_i32 = arith.constant 0 : i32
    %c0_i32_0 = arith.constant 0 : i32
    %c0_i32_1 = arith.constant 0 : i32
    return %c0_i32, %c0_i32_0 : i32, i32
  }
  func.func @transform_6(%arg0: i32, %arg1: memref<16xi32, #tpu.memory_space<smem>>, %arg2: memref<16xi32, #tpu.memory_space<smem>>) -> (i32, i32) {
    %c0_i32 = arith.constant 0 : i32
    %c0_i32_0 = arith.constant 0 : i32
    return %arg0, %c0_i32 : i32, i32
  }
}

</mosaic_0001>

<llo_original>
// kernel: tpu_custom_call.1
$region0: #{tpu_custom_call.1}
  #allocation0 [shape = 'u32[]', space=smem, size = 0x4, offset = 0x4, fixed_abs, tag = 'smem constant byte address 0x4 - core index']
  #allocation1 [shape = 'u32[72,128]{1,0:T(1,128)}', space=vmem, size = 0x9000, scoped, tag = 'internal scratch']
  #allocation2 [shape = 'f32[16,128]{1,0:T(8,128)}', space=vmem, size = 0x2000, scoped, tag = 'scratch operand']
  #allocation3 [shape = 'f32[16,128]{1,0:T(8,128)}', space=vmem, size = 0x2000, scoped, tag = 'scratch operand']
  #allocation4 [shape = 's32[2]{0}', space=sflag, size = 0x8, scoped, tag = 'scratch operand']
  #allocation5 [shape = 's32[1]{0}', space=sflag, size = 0x4, scoped, tag = 'scoped memory for tpu_custom_call.1']
  #allocation6 [shape = 'u8[512]{0}', space=smem, size = 0x200, scoped, tag = 'prefetched SMEM operand 0']
  #allocation7 [shape = 'u8[512]{0}', space=smem, size = 0x200, scoped, tag = 'prefetched SMEM operand 1']
  #allocation10 [shape = 's32[]', space=sflag, size = 0x4, offset = 0, fixed_abs, tag = 'sflag constant byte address 0x0 - dummy sync flag']
  #allocation11 [shape = 's32[]', space=sflag, size = 0x4, offset = 0, fixed_abs, tag = 'sflag constant byte address 0x0 - dummy sync flag']
  #allocation12 [shape = 'u32[]', space=smem, size = 0x4, offset = 0x44, fixed_abs, tag = 'smem constant byte address 0x44 - assertion arg 0']
  #allocation13 [shape = 'u32[]', space=smem, size = 0x4, offset = 0x48, fixed_abs, tag = 'smem constant byte address 0x48 - assertion arg 1']
  #allocation14 [shape = 's32[]', space=sflag, size = 0x4, offset = 0, fixed_abs, tag = 'sflag constant byte address 0x0 - dummy sync flag']
  #allocation15 [shape = 's32[]', space=sflag, size = 0x4, offset = 0, fixed_abs, tag = 'sflag constant byte address 0x0 - dummy sync flag']
  %s0 = inlined_call_operand.vmem [shape: s32[16], index: 0, kind: input, shape index: {}]
  %s1 = inlined_call_operand.vmem [shape: s32[16], index: 1, kind: input, shape index: {}]
  %s2 = inlined_call_operand.hbm [shape: f32[48,128], index: 2, kind: input, shape index: {}]
  %s3 = inlined_call_operand.hbm [shape: f32[32,128], index: 3, kind: input, shape index: {}]
  %s4 = inlined_call_operand.vmem [shape: s32[16,1], index: 4, kind: input, shape index: {}]
  %s5 = inlined_call_operand.vmem [shape: f32[2,128], index: 5, kind: input, shape index: {}]
  %s6 = inlined_call_operand.vmem [shape: f32[1,128], index: 6, kind: input, shape index: {}]
  %s7 = inlined_call_operand.vmem [shape: f32[1,128], index: 7, kind: input, shape index: {}]
  %s8 = inlined_call_operand.hbm [shape: f32[16,128], index: 8, kind: output, shape index: {}]
  %s9 = sld [smem:[#allocation0]]
  $region48: #{tpu_custom_call.1} parent=0
    _
  %s11 = ssub.s32 1, %s9
  %s12 = scalar_select 0, %s11, %s9
  %s14 = sshll.u32 %s0, 4
  %s15 = int_to_ptr.vmem [resolvable:$true] %s14
  %17 = dma.vmem_to_smem %s15, 16, [#allocation6], [#allocation5]
  %s19 = sshll.u32 %s1, 4
  %s20 = int_to_ptr.vmem [resolvable:$true] %s19
  %22 = dma.vmem_to_smem %s20, 16, [#allocation7], [#allocation5]
  %24 = dma.done [#allocation5], 32
  %25 = sfence
  $region1: #{tpu_custom_call.1} parent=0
    #allocation8 [shape = 'u8[8192]{0}', space=vmem, size = 0x2000, scoped, tag = 'output window, operand 0, single buffered']
    #allocation9 [shape = 's32[1]{0}', space=sflag, size = 0x4, scoped, tag = 'scoped memory for tpu_custom_call.1']
    %26 = vsyncpa [#allocation9], 0
    // Predicated region
    $region2: #{tpu_custom_call.1} parent=1 // pred_check
      _
    $region3: #{tpu_custom_call.1} parent=1 // pred_check_branch
      %28 = sbr.rel (0) target = $region5
    $region4: #{tpu_custom_call.1} parent=1 // pred_region
      _
    $region5: #{tpu_custom_call.1} parent=1 // pred_fallthru
      _
    // Predicated region
    $region6: #{tpu_custom_call.1} parent=1 // pred_check
      _
    $region7: #{tpu_custom_call.1} parent=1 // pred_check_branch
      %30 = sbr.rel (0) target = $region9
    $region8: #{tpu_custom_call.1} parent=1 // pred_region
      _
    $region9: #{tpu_custom_call.1} parent=1 // pred_fallthru
      _
    // Predicated region
    $region10: #{tpu_custom_call.1} parent=1 // pred_check
      _
    $region11: #{tpu_custom_call.1} parent=1 // pred_check_branch
      %32 = sbr.rel (0) target = $region13
    $region12: #{tpu_custom_call.1} parent=1 // pred_region
      _
    $region13: #{tpu_custom_call.1} parent=1 // pred_fallthru
      _
    // Predicated region
    $region14: #{tpu_custom_call.1} parent=1 // pred_check
      _
    $region15: #{tpu_custom_call.1} parent=1 // pred_check_branch
      %34 = sbr.rel (0) target = $region17
    $region16: #{tpu_custom_call.1} parent=1 // pred_region
      _
    $region17: #{tpu_custom_call.1} parent=1 // pred_fallthru
      _
    %s35 = smul.u32 0, 16
    loop: start=0, step=1, limit=16
    $region18: #{tpu_custom_call.1} parent=1 // loop_pre_header
      _
    $region19: #{tpu_custom_call.1} parent=1 // loop_header
      %s37 = sphi 0, %s41
      %p38 = scmp.ge.s32.totalorder %s37, 16
    $region20: #{tpu_custom_call.1} parent=1 // loop_header_branch
      %40 = sbr.rel (%p38) target = $region24
    $region21: #{tpu_custom_call.1} parent=1 // loop_body
      %s42 = sadd.s32 %s35, %s37
      %s43 = sld [smem:[#allocation6 + %s42]]
      %s44 = sld [smem:[#allocation7 + %s42]]
      %s45 = scalar_lea.hbm %s2, %s43
      %s46 = scalar_lea.vmem [#allocation2], %s37
      // Predicated region
      $region25: #{tpu_custom_call.1} parent=21 // pred_check
        _
      $region26: #{tpu_custom_call.1} parent=21 // pred_check_branch
        %48 = sbr.rel target = $region28
      $region27: #{tpu_custom_call.1} parent=21 // pred_region
        %49 = sst [smem:[#allocation12]] [#allocation11]
        %50 = sst [smem:[#allocation13]] [#allocation10]
      $region28: #{tpu_custom_call.1} parent=21 // pred_fallthru
        _
      %52 = shalt.err (0)
      %s54 = sshll.u32 %s45, 4
      %s55 = int_to_ptr.hbm [resolvable:$true] %s54
      %s56 = sshll.u32 %s46, 4
      %s57 = int_to_ptr.vmem [resolvable:$true] %s56
      %59 = dma.hbm_to_vmem [thread:$0]  %s55, 16, %s57, [#allocation4]
      %s60 = scalar_lea.hbm %s3, %s44
      %s61 = scalar_lea.vmem [#allocation3], %s37
      %s62 = scalar_lea.sflag [#allocation4], 1
      // Predicated region
      $region29: #{tpu_custom_call.1} parent=21 // pred_check
        _
      $region30: #{tpu_custom_call.1} parent=21 // pred_check_branch
        %64 = sbr.rel target = $region32
      $region31: #{tpu_custom_call.1} parent=21 // pred_region
        %65 = sst [smem:[#allocation12]] [#allocation15]
        %66 = sst [smem:[#allocation13]] [#allocation14]
      $region32: #{tpu_custom_call.1} parent=21 // pred_fallthru
        _
      %68 = shalt.err (0)
      %s70 = sshll.u32 %s60, 4
      %s71 = int_to_ptr.hbm [resolvable:$true] %s70
      %s72 = sshll.u32 %s61, 4
      %s73 = int_to_ptr.vmem [resolvable:$true] %s72
      %75 = dma.hbm_to_vmem [thread:$0]  %s71, 16, %s73, %s62
    $region22: #{tpu_custom_call.1} parent=1 // loop_footer
      %s41 = sadd.s32 1, %s37
    $region23: #{tpu_custom_call.1} parent=1 // loop_footer_branch
      %36 = sbr.rel target = $region19
    $region24: #{tpu_custom_call.1} parent=1 // loop_exit
      _
    loop: start=0, step=1, limit=16
    $region33: #{tpu_custom_call.1} parent=1 // loop_pre_header
      _
    $region34: #{tpu_custom_call.1} parent=1 // loop_header
      %s77 = sphi 0, %s81
      %p78 = scmp.ge.s32.totalorder %s77, 16
    $region35: #{tpu_custom_call.1} parent=1 // loop_header_branch
      %80 = sbr.rel (%p78) target = $region39
    $region36: #{tpu_custom_call.1} parent=1 // loop_body
      %s82 = smul.u32 1, 1
      %s83 = sshll.u32 %s82, 4
      %84 = dma.done [#allocation4], %s83
      %s85 = scalar_lea.sflag [#allocation4], 1
      %s86 = sshll.u32 %s82, 4
      %87 = dma.done %s85, %s86
    $region37: #{tpu_custom_call.1} parent=1 // loop_footer
      %s81 = sadd.s32 1, %s77
    $region38: #{tpu_custom_call.1} parent=1 // loop_footer_branch
      %76 = sbr.rel target = $region34
    $region39: #{tpu_custom_call.1} parent=1 // loop_exit
      _
    %v88 = vld [vmem:[#allocation2] sm:$0xff]
    %v89 = vld [vmem:[#allocation2 + $0x8] sm:$0xff]
    %v90 = vld [vmem:[#allocation3] sm:$0xff]
    %v91 = vld [vmem:[#allocation3 + $0x8] sm:$0xff]
    %v92 = vadd.f32 %v88, %v90
    %v93 = vadd.f32 %v89, %v91
    %v94 = vld [vmem:[%s4] sm:$0xff]
    %v95 = vld [vmem:[%s4 + $0x8] sm:$0xff]
    %vm96 = vcmp.eq.s32.totalorder %v94, 0
    %vm97 = vcmp.eq.s32.totalorder %v95, 0
    %v98 = vsel %vm96, 1, 0
    %v99 = vsel %vm97, 1, 0
    %v100 = vcvt.s32.f32 %v98
    %v101 = vcvt.s32.f32 %v99
    %v102 = vld [vmem:[%s5] sm:$0x1]
    %104 = vset.pattern.permute.xlu0 0
    %105 = vperm.xlu0 %104, %v100
    %v106 = vpop.permute.xlu0 %105
    %109 = vset.pattern.permute.xlu0 0
    %110 = vperm.xlu0 %109, %v101
    %v111 = vpop.permute.xlu0 %110
    %v113 = vperm.slane %v102, 0
    %v114 = vmul.f32 %v106, %v113
    %v115 = vmul.f32 %v111, %v113
    %v116 = vadd.f32 %v92, %v114
    %v117 = vadd.f32 %v93, %v115
    %vm118 = vcmp.eq.s32.totalorder %v94, 1
    %vm119 = vcmp.eq.s32.totalorder %v95, 1
    %v120 = vsel %vm118, 1, 0
    %v121 = vsel %vm119, 1, 0
    %v122 = vcvt.s32.f32 %v120
    %v123 = vcvt.s32.f32 %v121
    %v124 = vld [vmem:[%s5 + $0x1] sm:$0x1]
    %126 = vset.pattern.permute.xlu0 0
    %127 = vperm.xlu0 %126, %v122
    %v128 = vpop.permute.xlu0 %127
    %131 = vset.pattern.permute.xlu0 0
    %132 = vperm.xlu0 %131, %v123
    %v133 = vpop.permute.xlu0 %132
    %v135 = vperm.slane %v124, 0
    %v136 = vmul.f32 %v128, %v135
    %v137 = vmul.f32 %v133, %v135
    %v138 = vadd.f32 %v116, %v136
    %v139 = vadd.f32 %v117, %v137
    %140 = vadd.xlane.f32.xlu0 %v138
    %v141 = vpop.xlane.xlu0 %140
    %142 = vadd.xlane.f32.xlu0 %v139
    %v143 = vpop.xlane.xlu0 %142
    %v144 = vrcp.pop 128.0
    %v145 = vmul.f32 128.0, %v144
    %v146 = vsub.f32 1.0, %v145
    %v147 = vmul.f32 %v144, %v146
    %v148 = vadd.f32 %v144, %v147
    %vm149 = vweird.f32 %v144
    %v150 = vsel %vm149, %v144, %v148
    %v151 = vmul.f32 %v141, %v150
    %v152 = vmul.f32 %v143, %v150
    %v153 = vsub.f32 %v138, %v151
    %v154 = vsub.f32 %v139, %v152
    %v155 = vmul.f32 %v153, %v153
    %v156 = vmul.f32 %v154, %v154
    %157 = vadd.xlane.f32.xlu0 %v155
    %v158 = vpop.xlane.xlu0 %157
    %159 = vadd.xlane.f32.xlu0 %v156
    %v160 = vpop.xlane.xlu0 %159
    %v161 = vmul.f32 %v158, %v150
    %v162 = vmul.f32 %v160, %v150
    %v163 = vadd.f32 %v161, 1e-12
    %v164 = vadd.f32 %v162, 1e-12
    %v165 = vrsqrt.pop %v163
    %v166 = vmul.f32 %v165, %v163
    %v167 = vmul.f32 %v166, %v165
    %v168 = vmul.f32 0.5, %v167
    %v169 = vsub.f32 1.5, %v168
    %v170 = vmul.f32 %v165, %v169
    %vm171 = vweird.f32 %v163
    %vm172 = vweird.f32 %v165
    %vm173 = vmor %vm171, %vm172
    %v174 = vsel %vm173, %v165, %v170
    %v175 = vrsqrt.pop %v164
    %v176 = vmul.f32 %v175, %v164
    %v177 = vmul.f32 %v176, %v175
    %v178 = vmul.f32 0.5, %v177
    %v179 = vsub.f32 1.5, %v178
    %v180 = vmul.f32 %v175, %v179
    %vm181 = vweird.f32 %v164
    %vm182 = vweird.f32 %v175
    %vm183 = vmor %vm181, %vm182
    %v184 = vsel %vm183, %v175, %v180
    %v185 = vmul.f32 %v153, %v174
    %v186 = vmul.f32 %v154, %v184
    %v187 = vld [vmem:[%s6] sm:$0x1]
    %v189 = vperm.slane %v187, 0
    %v191 = vmul.f32 %v185, %v189
    %v192 = vmul.f32 %v186, %v189
    %v193 = vld [vmem:[%s7] sm:$0x1]
    %v195 = vperm.slane %v193, 0
    %v197 = vadd.f32 %v191, %v195
    %v198 = vadd.f32 %v192, %v195
    %199 = vst [vmem:[#allocation8] sm:$0xff] %v197
    %200 = vst [vmem:[#allocation8 + $0x8] sm:$0xff] %v198
    // Predicated region
    $region40: #{tpu_custom_call.1} parent=1 // pred_check
      _
    $region41: #{tpu_custom_call.1} parent=1 // pred_check_branch
      %202 = sbr.rel (0) target = $region43
    $region42: #{tpu_custom_call.1} parent=1 // pred_region
      %204 = vsyncadd [#allocation9], 0
      %s205 = sshll.u32 [#allocation8], 4
      %s206 = int_to_ptr.vmem [resolvable:$true] %s205
      %s207 = sshll.u32 %s8, 4
      %s208 = int_to_ptr.hbm [resolvable:$true] %s207
      %213 = dma.vmem_to_hbm [thread:$0]  %s206, 256, %s208, [#allocation9], 128, 128, 8
    $region43: #{tpu_custom_call.1} parent=1 // pred_fallthru
      _
    // Predicated region
    $region44: #{tpu_custom_call.1} parent=1 // pred_check
      _
    $region45: #{tpu_custom_call.1} parent=1 // pred_check_branch
      %215 = sbr.rel (0) target = $region47
    $region46: #{tpu_custom_call.1} parent=1 // pred_region
      %217 = dma.done [#allocation9], 256
    $region47: #{tpu_custom_call.1} parent=1 // pred_fallthru
      _
    %218 = vsyncpa [#allocation9], 1
  %219 = vsyncmov [#allocation4]
  %s220 = vpop.sfrf %219
  %p221 = scmp.eq.s32.totalorder %s220, 0
  %p222 = pneg %p221
  %224 = shalt.err (%p222)
  %s225 = scalar_lea.sflag [#allocation4], 1
  %226 = vsyncmov %s225
  %s227 = vpop.sfrf %226
  %p228 = scmp.eq.s32.totalorder %s227, 0
  %p229 = pneg %p228
  %231 = shalt.err (%p229)

</llo_original>
